<compile_context>
chip_gen: v7x
topology: tpu7x:2x2x1
jax: 0.10.0
libtpu: 0.0.40
codegen_flags: <defaults>
</compile_context>

<pallas_src>
import functools

import jax
import jax.numpy as jnp
from jax import lax
from jax.experimental import pallas as pl
from jax.experimental.pallas import tpu as pltpu


def mlp_kernel(x_ref, w1_ref, b1_ref, w2_ref, b2_ref, w3_ref, b3_ref, o_ref, *, sub):
    bm, d_in = x_ref.shape          # (bm, 11) row-major batch tile
    h1_dim = w1_ref.shape[0]        # 128
    h2_dim = w2_ref.shape[0]        # 32

    # Hoisted, loop-invariant lane-broadcasts (JAX does not CSE broadcast_in_dim).
    b1b = jnp.broadcast_to(b1_ref[...], (h1_dim, sub))   # (128, sub)
    b2b = jnp.broadcast_to(b2_ref[...], (h2_dim, sub))   # (32, sub)
    b3b = jnp.broadcast_to(b3_ref[...], (1, sub))        # (1, sub)
    w3b = jnp.broadcast_to(w3_ref[...], (h2_dim, sub))   # (32, sub) column weight

    def body(j, carry):
        start = pl.multiple_of(j * sub, sub)
        x_sub = x_ref[pl.ds(start, sub), :]               # (sub, 11) row-major load
        xt = x_sub.T                                      # (11, sub): batch on lanes (XLU)

        # fc1 + ReLU : (128, 11) @ (11, sub) -> (128, sub)   [stays in vregs]
        h1 = jnp.dot(w1_ref[...], xt, preferred_element_type=jnp.float32)
        h1 = jnp.maximum(h1 + b1b, 0.0)

        # fc2 + ReLU : (32, 128) @ (128, sub) -> (32, sub)
        h2 = jnp.dot(w2_ref[...], h1, preferred_element_type=jnp.float32)
        h2 = jnp.maximum(h2 + b2b, 0.0)

        # fc3 on VPU/XLU: broadcast-multiply + sublane reduce -> (1, sub), lane-dense.
        out = jnp.sum(w3b * h2, axis=0, keepdims=True) + b3b
        o_ref[:, pl.ds(start, sub)] = out.astype(o_ref.dtype)
        return carry

    lax.fori_loop(0, bm // sub, body, 0, unroll=True)


def binary_classifier_forward(x, params, *, bm=2048, sub=128):
    """x: (B, 11) float32 row-major.  Returns (B, 1) float32 logits."""
    w1, b1, w2, b2, w3, b3 = params     # torch-native (out, in) weights, (out, 1) biases
    B, d_in = x.shape
    h1_dim, h2_dim = w1.shape[0], w2.shape[0]

    # Sub-tile (lane) width and batch tile sizing.
    sub = max(128, (sub // 128) * 128)
    bm = max(sub, (bm // sub) * sub)
    B_pad = ((B + sub - 1) // sub) * sub
    if B_pad >= 2 * sub:
        # v7x megacore: keep at least 2 "parallel" grid tiles when the batch allows it.
        bm = min(bm, max(sub, ((B_pad // 2) // sub) * sub))
    bm = min(bm, B_pad)
    B_pad = ((B_pad + bm - 1) // bm) * bm

    # Single fused pad on the batch dim; no transpose, no zeros-init + scatter.
    x_pad = jnp.pad(x, ((0, B_pad - B), (0, 0))) if B_pad != B else x

    # Tiny one-off parameter relayout: fc3 weight as a (32, 1) column for the VPU reduction.
    w3c = w3.T

    param_bytes = 4 * (w1.size + b1.size + w2.size + b2.size + w3.size + b3.size)
    cost = pl.CostEstimate(
        flops=2 * (d_in * h1_dim + h1_dim * h2_dim + h2_dim) * B_pad,
        transcendentals=0,
        bytes_accessed=(d_in + 1) * 4 * B_pad + param_bytes,
    )

    full = lambda a: pl.BlockSpec(a.shape, lambda i: (0, 0))   # weights stay resident

    out_t = pl.pallas_call(
        functools.partial(mlp_kernel, sub=sub),
        out_shape=jax.ShapeDtypeStruct((1, B_pad), jnp.float32),
        grid_spec=pltpu.PrefetchScalarGridSpec(
            num_scalar_prefetch=0,
            grid=(B_pad // bm,),
            in_specs=[
                pl.BlockSpec((bm, d_in), lambda i: (i, 0)),    # row-major x tile
                full(w1), full(b1),
                full(w2), full(b2),
                full(w3c), full(b3),
            ],
            out_specs=pl.BlockSpec((1, bm), lambda i: (0, i)),  # lane-dense logits
        ),
        compiler_params=pltpu.CompilerParams(
            dimension_semantics=("parallel",),   # megacore-shardable batch tiles (v7x)
        ),
        cost_estimate=cost,
    )(x_pad, w1, b1, w2, b2, w3c, b3)

    return out_t[:, :B].T    # (1, B) -> (B, 1): trivial relayout of a single row


def init_params(key):
    """Deterministic init matching nn.Linear (11->128->32->1).
    Weights kept PyTorch-native (out, in); biases stored as (out, 1) columns."""
    k1, k2, k3, k4, k5, k6 = jax.random.split(key, 6)

    def lin(kw, kb, fan_in, fan_out):
        # PyTorch default: U(-1/sqrt(fan_in), 1/sqrt(fan_in))
        bound = 1.0 / jnp.sqrt(jnp.float32(fan_in))
        w = jax.random.uniform(kw, (fan_out, fan_in), jnp.float32, -bound, bound)
        b = jax.random.uniform(kb, (fan_out, 1), jnp.float32, -bound, bound)
        return w, b

    w1, b1 = lin(k1, k2, 11, 128)
    w2, b2 = lin(k3, k4, 128, 32)
    w3, b3 = lin(k5, k6, 32, 1)
    return (w1, b1, w2, b2, w3, b3)


def reference_forward(x, params):
    w1, b1, w2, b2, w3, b3 = params
    hp = jax.lax.Precision.HIGHEST
    h1 = jnp.maximum(jnp.dot(x, w1.T, precision=hp) + b1.T, 0.0)
    h2 = jnp.maximum(jnp.dot(h1, w2.T, precision=hp) + b2.T, 0.0)
    return jnp.dot(h2, w3.T, precision=hp) + b3.T


if __name__ == "__main__":
    key = jax.random.PRNGKey(0)
    kx, kp = jax.random.split(key)

    # B=600 (not a multiple of 128) exercises: padded tail, a 3-step "parallel" grid
    # (v7x megacore path), and a 2-iteration in-kernel sub-tile loop.
    B = 600
    x = jax.random.normal(kx, (B, 11), jnp.float32)
    params = init_params(kp)

    out = binary_classifier_forward(x, params)
    out = jax.block_until_ready(out)

    ref = reference_forward(x, params)
    assert out.shape == (B, 1)
    max_err = float(jnp.max(jnp.abs(out - ref)))
    assert jnp.allclose(out, ref, atol=1e-4, rtol=1e-4), f"mismatch vs reference: {max_err}"

    print("KERNEL_OK")
</pallas_src>

<mosaic_0001>
module attributes {stable_mosaic.version = 11 : i64} {
  func.func @mlp_kernel(%arg0: i32, %arg1: memref<256x11xf32, #tpu.memory_space<vmem>>, %arg2: memref<128x11xf32, #tpu.memory_space<vmem>>, %arg3: memref<128x1xf32, #tpu.memory_space<vmem>>, %arg4: memref<32x128xf32, #tpu.memory_space<vmem>>, %arg5: memref<32x1xf32, #tpu.memory_space<vmem>>, %arg6: memref<32x1xf32, #tpu.memory_space<vmem>>, %arg7: memref<1x1xf32, #tpu.memory_space<vmem>>, %arg8: memref<1x256xf32, #tpu.memory_space<vmem>>) attributes {dimension_semantics = [#tpu.dimension_semantics<parallel>], iteration_bounds = array<i64: 3>, scalar_prefetch = 0 : i64, scratch_operands = 0 : i64, tpu.core_type = #tpu.core_type<tc>, window_params = [{transform_indices = @transform_0, window_bounds = array<i64: 256, 11>}, {pipeline_mode = #tpu.pipeline_mode<synchronous>, transform_indices = @transform_1, window_bounds = array<i64: 128, 11>}, {pipeline_mode = #tpu.pipeline_mode<synchronous>, transform_indices = @transform_2, window_bounds = array<i64: 128, 1>}, {pipeline_mode = #tpu.pipeline_mode<synchronous>, transform_indices = @transform_3, window_bounds = array<i64: 32, 128>}, {pipeline_mode = #tpu.pipeline_mode<synchronous>, transform_indices = @transform_4, window_bounds = array<i64: 32, 1>}, {pipeline_mode = #tpu.pipeline_mode<synchronous>, transform_indices = @transform_5, window_bounds = array<i64: 32, 1>}, {pipeline_mode = #tpu.pipeline_mode<synchronous>, transform_indices = @transform_6, window_bounds = array<i64: 1, 1>}, {transform_indices = @transform_7, window_bounds = array<i64: 1, 256>}]} {
    %c0 = arith.constant 0 : index
    %c0_0 = arith.constant 0 : index
    %0 = vector.load %arg3[%c0, %c0_0] : memref<128x1xf32, #tpu.memory_space<vmem>>, vector<128x1xf32>
    %1 = vector.shape_cast %0 : vector<128x1xf32> to vector<128x1xf32>
    %2 = vector.broadcast %1 : vector<128x1xf32> to vector<128x128xf32>
    %c0_1 = arith.constant 0 : index
    %c0_2 = arith.constant 0 : index
    %3 = vector.load %arg5[%c0_1, %c0_2] : memref<32x1xf32, #tpu.memory_space<vmem>>, vector<32x1xf32>
    %4 = vector.shape_cast %3 : vector<32x1xf32> to vector<32x1xf32>
    %5 = vector.broadcast %4 : vector<32x1xf32> to vector<32x128xf32>
    %c0_3 = arith.constant 0 : index
    %c0_4 = arith.constant 0 : index
    %6 = vector.load %arg7[%c0_3, %c0_4] : memref<1x1xf32, #tpu.memory_space<vmem>>, vector<1x1xf32>
    %7 = vector.shape_cast %6 : vector<1x1xf32> to vector<1x1xf32>
    %8 = vector.broadcast %7 : vector<1x1xf32> to vector<1x128xf32>
    %c0_5 = arith.constant 0 : index
    %c0_6 = arith.constant 0 : index
    %9 = vector.load %arg6[%c0_5, %c0_6] : memref<32x1xf32, #tpu.memory_space<vmem>>, vector<32x1xf32>
    %10 = vector.shape_cast %9 : vector<32x1xf32> to vector<32x1xf32>
    %11 = vector.broadcast %10 : vector<32x1xf32> to vector<32x128xf32>
    %c0_i32 = arith.constant 0 : i32
    %c128_i32 = arith.constant 128 : i32
    %12 = arith.muli %c0_i32, %c128_i32 : i32
    %13 = tpu.assume_multiple %12, 128 : i32
    %14 = arith.index_cast %13 : i32 to index
    %c0_7 = arith.constant 0 : index
    %15 = vector.load %arg1[%14, %c0_7] : memref<256x11xf32, #tpu.memory_space<vmem>>, vector<128x11xf32>
    %16 = tpu.transpose %15, [1, 0] : vector<128x11xf32> -> vector<11x128xf32>
    %c0_8 = arith.constant 0 : index
    %c0_9 = arith.constant 0 : index
    %17 = vector.load %arg2[%c0_8, %c0_9] : memref<128x11xf32, #tpu.memory_space<vmem>>, vector<128x11xf32>
    %cst = arith.constant dense<0.000000e+00> : vector<128x128xf32>
    %18 = tpu.matmul %17, %16, %cst {dimension_numbers = #tpu.dot_dimension_numbers<[1], [0], [0], [1], [0, 0, 1, 1], [], []>} : vector<128x11xf32>, vector<11x128xf32>, vector<128x128xf32> -> vector<128x128xf32>
    %19 = arith.addf %18, %2 : vector<128x128xf32>
    %cst_10 = arith.constant 0.000000e+00 : f32
    %20 = vector.broadcast %cst_10 : f32 to vector<128x128xf32>
    %21 = arith.maximumf %19, %20 : vector<128x128xf32>
    %c0_11 = arith.constant 0 : index
    %c0_12 = arith.constant 0 : index
    %22 = vector.load %arg4[%c0_11, %c0_12] : memref<32x128xf32, #tpu.memory_space<vmem>>, vector<32x128xf32>
    %cst_13 = arith.constant dense<0.000000e+00> : vector<32x128xf32>
    %23 = tpu.matmul %22, %21, %cst_13 {dimension_numbers = #tpu.dot_dimension_numbers<[1], [0], [0], [1], [0, 0, 1, 1], [], []>} : vector<32x128xf32>, vector<128x128xf32>, vector<32x128xf32> -> vector<32x128xf32>
    %24 = arith.addf %23, %5 : vector<32x128xf32>
    %cst_14 = arith.constant 0.000000e+00 : f32
    %25 = vector.broadcast %cst_14 : f32 to vector<32x128xf32>
    %26 = arith.maximumf %24, %25 : vector<32x128xf32>
    %27 = arith.mulf %11, %26 : vector<32x128xf32>
    %cst_15 = arith.constant dense<0.000000e+00> : vector<128xf32>
    %28 = vector.multi_reduction <add>, %27, %cst_15 [0] : vector<32x128xf32> to vector<128xf32>
    %29 = vector.shape_cast %28 : vector<128xf32> to vector<1x128xf32>
    %30 = arith.addf %29, %8 : vector<1x128xf32>
    %c0_16 = arith.constant 0 : index
    %31 = arith.index_cast %13 : i32 to index
    %32 = vector.load %arg8[%c0_16, %31] : memref<1x256xf32, #tpu.memory_space<vmem>>, vector<1x128xf32>
    tpu.vector_store %arg8[%c0_16, %31], %30 {strides = array<i32>} : memref<1x256xf32, #tpu.memory_space<vmem>>, vector<1x128xf32>,
    %c1_i32 = arith.constant 1 : i32
    %c128_i32_17 = arith.constant 128 : i32
    %33 = arith.muli %c1_i32, %c128_i32_17 : i32
    %34 = tpu.assume_multiple %33, 128 : i32
    %35 = arith.index_cast %34 : i32 to index
    %c0_18 = arith.constant 0 : index
    %36 = vector.load %arg1[%35, %c0_18] : memref<256x11xf32, #tpu.memory_space<vmem>>, vector<128x11xf32>
    %37 = tpu.transpose %36, [1, 0] : vector<128x11xf32> -> vector<11x128xf32>
    %c0_19 = arith.constant 0 : index
    %c0_20 = arith.constant 0 : index
    %38 = vector.load %arg2[%c0_19, %c0_20] : memref<128x11xf32, #tpu.memory_space<vmem>>, vector<128x11xf32>
    %cst_21 = arith.constant dense<0.000000e+00> : vector<128x128xf32>
    %39 = tpu.matmul %38, %37, %cst_21 {dimension_numbers = #tpu.dot_dimension_numbers<[1], [0], [0], [1], [0, 0, 1, 1], [], []>} : vector<128x11xf32>, vector<11x128xf32>, vector<128x128xf32> -> vector<128x128xf32>
    %40 = arith.addf %39, %2 : vector<128x128xf32>
    %cst_22 = arith.constant 0.000000e+00 : f32
    %41 = vector.broadcast %cst_22 : f32 to vector<128x128xf32>
    %42 = arith.maximumf %40, %41 : vector<128x128xf32>
    %c0_23 = arith.constant 0 : index
    %c0_24 = arith.constant 0 : index
    %43 = vector.load %arg4[%c0_23, %c0_24] : memref<32x128xf32, #tpu.memory_space<vmem>>, vector<32x128xf32>
    %cst_25 = arith.constant dense<0.000000e+00> : vector<32x128xf32>
    %44 = tpu.matmul %43, %42, %cst_25 {dimension_numbers = #tpu.dot_dimension_numbers<[1], [0], [0], [1], [0, 0, 1, 1], [], []>} : vector<32x128xf32>, vector<128x128xf32>, vector<32x128xf32> -> vector<32x128xf32>
    %45 = arith.addf %44, %5 : vector<32x128xf32>
    %cst_26 = arith.constant 0.000000e+00 : f32
    %46 = vector.broadcast %cst_26 : f32 to vector<32x128xf32>
    %47 = arith.maximumf %45, %46 : vector<32x128xf32>
    %48 = arith.mulf %11, %47 : vector<32x128xf32>
    %cst_27 = arith.constant dense<0.000000e+00> : vector<128xf32>
    %49 = vector.multi_reduction <add>, %48, %cst_27 [0] : vector<32x128xf32> to vector<128xf32>
    %50 = vector.shape_cast %49 : vector<128xf32> to vector<1x128xf32>
    %51 = arith.addf %50, %8 : vector<1x128xf32>
    %c0_28 = arith.constant 0 : index
    %52 = arith.index_cast %34 : i32 to index
    %53 = vector.load %arg8[%c0_28, %52] : memref<1x256xf32, #tpu.memory_space<vmem>>, vector<1x128xf32>
    tpu.vector_store %arg8[%c0_28, %52], %51 {strides = array<i32>} : memref<1x256xf32, #tpu.memory_space<vmem>>, vector<1x128xf32>,
    %c2_i32 = arith.constant 2 : i32
    return
  }
  func.func @transform_0(%arg0: i32) -> (i32, i32) {
    %c0_i32 = arith.constant 0 : i32
    %c0_i32_0 = arith.constant 0 : i32
    return %arg0, %c0_i32 : i32, i32
  }
  func.func @transform_1(%arg0: i32) -> (i32, i32) {
    %c0_i32 = arith.constant 0 : i32
    %c0_i32_0 = arith.constant 0 : i32
    %c0_i32_1 = arith.constant 0 : i32
    return %c0_i32, %c0_i32_0 : i32, i32
  }
  func.func @transform_2(%arg0: i32) -> (i32, i32) {
    %c0_i32 = arith.constant 0 : i32
    %c0_i32_0 = arith.constant 0 : i32
    %c0_i32_1 = arith.constant 0 : i32
    return %c0_i32, %c0_i32_0 : i32, i32
  }
  func.func @transform_3(%arg0: i32) -> (i32, i32) {
    %c0_i32 = arith.constant 0 : i32
    %c0_i32_0 = arith.constant 0 : i32
    %c0_i32_1 = arith.constant 0 : i32
    return %c0_i32, %c0_i32_0 : i32, i32
  }
  func.func @transform_4(%arg0: i32) -> (i32, i32) {
    %c0_i32 = arith.constant 0 : i32
    %c0_i32_0 = arith.constant 0 : i32
    %c0_i32_1 = arith.constant 0 : i32
    return %c0_i32, %c0_i32_0 : i32, i32
  }
  func.func @transform_5(%arg0: i32) -> (i32, i32) {
    %c0_i32 = arith.constant 0 : i32
    %c0_i32_0 = arith.constant 0 : i32
    %c0_i32_1 = arith.constant 0 : i32
    return %c0_i32, %c0_i32_0 : i32, i32
  }
  func.func @transform_6(%arg0: i32) -> (i32, i32) {
    %c0_i32 = arith.constant 0 : i32
    %c0_i32_0 = arith.constant 0 : i32
    %c0_i32_1 = arith.constant 0 : i32
    return %c0_i32, %c0_i32_0 : i32, i32
  }
  func.func @transform_7(%arg0: i32) -> (i32, i32) {
    %c0_i32 = arith.constant 0 : i32
    %c0_i32_0 = arith.constant 0 : i32
    return %c0_i32, %arg0 : i32, i32
  }
}

</mosaic_0001>

<llo_original>
// kernel: tpu_custom_call.1
$region0: #{tpu_custom_call.1}
  #allocation0 [shape = 'u32[]', space=smem, size = 0x4, offset = 0x4, fixed_abs, tag = 'smem constant byte address 0x4 - core index']
  #allocation1 [shape = 'u32[144,128]{1,0:T(1,128)}', space=vmem, size = 0x12000, scoped, tag = 'internal scratch']
  #allocation2 [shape = 'f32[1,1]{1,0:T(1,128)S(1)}', space=vmem, size = 0x200, scoped, tag = 'scoped memory for tpu_custom_call.1']
  %s0 = inlined_call_operand.vmem [shape: f32[768,11], index: 0, kind: input, shape index: {}]
  %s1 = inlined_call_operand.vmem [shape: f32[128,11], index: 1, kind: input, shape index: {}]
  %s2 = inlined_call_operand.vmem [shape: f32[128,1], index: 2, kind: input, shape index: {}]
  %s3 = inlined_call_operand.vmem [shape: f32[32,128], index: 3, kind: input, shape index: {}]
  %s4 = inlined_call_operand.vmem [shape: f32[32,1], index: 4, kind: input, shape index: {}]
  %s5 = inlined_call_operand.vmem [shape: f32[32,1], index: 5, kind: input, shape index: {}]
  %s6 = inlined_call_operand.<no memory space> [shape: f32[1,1], index: 6, kind: input, shape index: {}]
  %s7 = inlined_call_operand.hbm [shape: f32[1,768], index: 7, kind: output, shape index: {}]
  %s8 = sld [smem:[#allocation0]]
  $region61: #{tpu_custom_call.1} parent=0
    _
  %s10 = ssub.s32 1, %s8
  %s11 = scalar_select 0, %s10, %s8
  %v12 = vstv %s6
  %13 = vst [vmem:[#allocation2] sm:$0x1] %v12
  $region1: #{tpu_custom_call.1} parent=0
    #allocation3 [shape = 'u8[2048]{0}', space=vmem, size = 0x800, scoped, tag = 'output window, operand 0']
    #allocation4 [shape = 's32[2]{0}', space=sflag, size = 0x8, scoped, tag = 'scoped memory for tpu_custom_call.1']
    %14 = vsyncpa [#allocation4], 0
    %s15 = scalar_lea.sflag [#allocation4], 1
    %16 = vsyncpa %s15, 0
    loop: start=0, step=1, limit=5
    $region2: #{tpu_custom_call.1} parent=1 // loop_pre_header
      _
    $region3: #{tpu_custom_call.1} parent=1 // loop_header
      %s18 = sphi 0, %s22
      %p19 = scmp.ge.s32.totalorder %s18, 5
      %s28 = sphi 0, %s30
      %s31 = sphi 0, %s28
      %s32 = sphi 0, %s31
      %s48 = sphi 0, %s32
      %s52 = sphi 0, %s52
      %s54 = sphi 0, %s52
      %s55 = sphi 0, %s54
      %s69 = sphi 0, %s55
      %s73 = sphi 0, %s73
      %s75 = sphi 0, %s73
      %s76 = sphi 0, %s75
      %s90 = sphi 0, %s76
      %s94 = sphi 0, %s94
      %s96 = sphi 0, %s94
      %s97 = sphi 0, %s96
      %s111 = sphi 0, %s97
      %s115 = sphi 0, %s115
      %s117 = sphi 0, %s115
      %s118 = sphi 0, %s117
      %s132 = sphi 0, %s118
      %s136 = sphi 0, %s136
      %s138 = sphi 0, %s136
      %s139 = sphi 0, %s138
      %s153 = sphi 0, %s139
      %s157 = sphi 0, %s157
      %s159 = sphi 0, %s157
      %s160 = sphi 0, %s159
      %s174 = sphi 0, %s160
      %s180 = sphi 0, %s182
      %s183 = sphi 0, %s180
      %s184 = sphi 0, %s183
      %s200 = sphi 0, %s184
    $region4: #{tpu_custom_call.1} parent=1 // loop_header_branch
      %21 = sbr.rel (%p19) target = $region8
    $region5: #{tpu_custom_call.1} parent=1 // loop_body
      %s23 = ssub.s32 %s18, 1
      %s24 = ssub.s32 %s18, 2
      %s25 = sadd.s32 %s18, 1
      %s26 = ssub.s32 %s18, %s25
      %p27 = scmp.eq.s32.totalorder %s26, 0
      %s29 = sadd.s32 %s28, 1
      %s30 = scalar_select %p27, %s28, %s29
      %p33 = pneg %p27
      %p34 = scmp.eq.s32.totalorder %s18, 2
      %p35 = por %p33, %p34
      %p36 = scmp.ne.s32.totalorder %s28, %s31
      %p37 = scmp.eq.s32.totalorder %s18, 0
      %p38 = por %p36, %p37
      %p39 = scmp.ne.s32.totalorder %s28, %s31
      %p40 = scmp.eq.s32.totalorder %s23, 2
      %p41 = por %p39, %p40
      %p42 = scmp.ne.s32.totalorder %s31, %s32
      %p43 = scmp.eq.s32.totalorder %s23, 0
      %p44 = por %p42, %p43
      %p45 = scmp.ne.s32.totalorder %s31, %s32
      %p46 = scmp.eq.s32.totalorder %s24, 2
      %p47 = por %p45, %p46
      %p49 = scmp.ne.s32.totalorder %s32, %s48
      %p50 = scmp.eq.s32.totalorder %s24, 0
      %p51 = por %p49, %p50
      %s53 = sadd.s32 %s52, 1
      %p56 = scmp.eq.s32.totalorder %s18, 2
      %p57 = scmp.ne.s32.totalorder %s52, %s54
      %p58 = scmp.eq.s32.totalorder %s18, 0
      %p59 = por %p57, %p58
      %p60 = scmp.ne.s32.totalorder %s52, %s54
      %p61 = scmp.eq.s32.totalorder %s23, 2
      %p62 = por %p60, %p61
      %p63 = scmp.ne.s32.totalorder %s54, %s55
      %p64 = scmp.eq.s32.totalorder %s23, 0
      %p65 = por %p63, %p64
      %p66 = scmp.ne.s32.totalorder %s54, %s55
      %p67 = scmp.eq.s32.totalorder %s24, 2
      %p68 = por %p66, %p67
      %p70 = scmp.ne.s32.totalorder %s55, %s69
      %p71 = scmp.eq.s32.totalorder %s24, 0
      %p72 = por %p70, %p71
      %s74 = sadd.s32 %s73, 1
      %p77 = scmp.eq.s32.totalorder %s18, 2
      %p78 = scmp.ne.s32.totalorder %s73, %s75
      %p79 = scmp.eq.s32.totalorder %s18, 0
      %p80 = por %p78, %p79
      %p81 = scmp.ne.s32.totalorder %s73, %s75
      %p82 = scmp.eq.s32.totalorder %s23, 2
      %p83 = por %p81, %p82
      %p84 = scmp.ne.s32.totalorder %s75, %s76
      %p85 = scmp.eq.s32.totalorder %s23, 0
      %p86 = por %p84, %p85
      %p87 = scmp.ne.s32.totalorder %s75, %s76
      %p88 = scmp.eq.s32.totalorder %s24, 2
      %p89 = por %p87, %p88
      %p91 = scmp.ne.s32.totalorder %s76, %s90
      %p92 = scmp.eq.s32.totalorder %s24, 0
      %p93 = por %p91, %p92
      %s95 = sadd.s32 %s94, 1
      %p98 = scmp.eq.s32.totalorder %s18, 2
      %p99 = scmp.ne.s32.totalorder %s94, %s96
      %p100 = scmp.eq.s32.totalorder %s18, 0
      %p101 = por %p99, %p100
      %p102 = scmp.ne.s32.totalorder %s94, %s96
      %p103 = scmp.eq.s32.totalorder %s23, 2
      %p104 = por %p102, %p103
      %p105 = scmp.ne.s32.totalorder %s96, %s97
      %p106 = scmp.eq.s32.totalorder %s23, 0
      %p107 = por %p105, %p106
      %p108 = scmp.ne.s32.totalorder %s96, %s97
      %p109 = scmp.eq.s32.totalorder %s24, 2
      %p110 = por %p108, %p109
      %p112 = scmp.ne.s32.totalorder %s97, %s111
      %p113 = scmp.eq.s32.totalorder %s24, 0
      %p114 = por %p112, %p113
      %s116 = sadd.s32 %s115, 1
      %p119 = scmp.eq.s32.totalorder %s18, 2
      %p120 = scmp.ne.s32.totalorder %s115, %s117
      %p121 = scmp.eq.s32.totalorder %s18, 0
      %p122 = por %p120, %p121
      %p123 = scmp.ne.s32.totalorder %s115, %s117
      %p124 = scmp.eq.s32.totalorder %s23, 2
      %p125 = por %p123, %p124
      %p126 = scmp.ne.s32.totalorder %s117, %s118
      %p127 = scmp.eq.s32.totalorder %s23, 0
      %p128 = por %p126, %p127
      %p129 = scmp.ne.s32.totalorder %s117, %s118
      %p130 = scmp.eq.s32.totalorder %s24, 2
      %p131 = por %p129, %p130
      %p133 = scmp.ne.s32.totalorder %s118, %s132
      %p134 = scmp.eq.s32.totalorder %s24, 0
      %p135 = por %p133, %p134
      %s137 = sadd.s32 %s136, 1
      %p140 = scmp.eq.s32.totalorder %s18, 2
      %p141 = scmp.ne.s32.totalorder %s136, %s138
      %p142 = scmp.eq.s32.totalorder %s18, 0
      %p143 = por %p141, %p142
      %p144 = scmp.ne.s32.totalorder %s136, %s138
      %p145 = scmp.eq.s32.totalorder %s23, 2
      %p146 = por %p144, %p145
      %p147 = scmp.ne.s32.totalorder %s138, %s139
      %p148 = scmp.eq.s32.totalorder %s23, 0
      %p149 = por %p147, %p148
      %p150 = scmp.ne.s32.totalorder %s138, %s139
      %p151 = scmp.eq.s32.totalorder %s24, 2
      %p152 = por %p150, %p151
      %p154 = scmp.ne.s32.totalorder %s139, %s153
      %p155 = scmp.eq.s32.totalorder %s24, 0
      %p156 = por %p154, %p155
      %s158 = sadd.s32 %s157, 1
      %p161 = scmp.eq.s32.totalorder %s18, 2
      %p162 = scmp.ne.s32.totalorder %s157, %s159
      %p163 = scmp.eq.s32.totalorder %s18, 0
      %p164 = por %p162, %p163
      %p165 = scmp.ne.s32.totalorder %s157, %s159
      %p166 = scmp.eq.s32.totalorder %s23, 2
      %p167 = por %p165, %p166
      %p168 = scmp.ne.s32.totalorder %s159, %s160
      %p169 = scmp.eq.s32.totalorder %s23, 0
      %p170 = por %p168, %p169
      %p171 = scmp.ne.s32.totalorder %s159, %s160
      %p172 = scmp.eq.s32.totalorder %s24, 2
      %p173 = por %p171, %p172
      %p175 = scmp.ne.s32.totalorder %s160, %s174
      %p176 = scmp.eq.s32.totalorder %s24, 0
      %p177 = por %p175, %p176
      %s178 = ssub.s32 %s18, %s25
      %p179 = scmp.eq.s32.totalorder %s178, 0
      %s181 = sadd.s32 %s180, 1
      %s182 = scalar_select %p179, %s180, %s181
      %p185 = pneg %p179
      %p186 = scmp.eq.s32.totalorder %s18, 2
      %p187 = por %p185, %p186
      %p188 = scmp.ne.s32.totalorder %s180, %s183
      %p189 = scmp.eq.s32.totalorder %s18, 0
      %p190 = por %p188, %p189
      %p191 = scmp.ne.s32.totalorder %s180, %s183
      %p192 = scmp.eq.s32.totalorder %s23, 2
      %p193 = por %p191, %p192
      %p194 = scmp.ne.s32.totalorder %s183, %s184
      %p195 = scmp.eq.s32.totalorder %s23, 0
      %p196 = por %p194, %p195
      %p197 = scmp.ne.s32.totalorder %s183, %s184
      %p198 = scmp.eq.s32.totalorder %s24, 2
      %p199 = por %p197, %p198
      %p201 = scmp.ne.s32.totalorder %s184, %s200
      %p202 = scmp.eq.s32.totalorder %s24, 0
      %p203 = por %p201, %p202
      %p204 = scmp.le.s32.totalorder 1, %s18
      %p205 = scmp.lt.s32.totalorder %s18, 4
      %p206 = pnand %p204, %p205
      %p207 = pneg %p206
      // Predicated region
      $region9: #{tpu_custom_call.1} parent=5 // pred_check
        _
      $region10: #{tpu_custom_call.1} parent=5 // pred_check_branch
        %209 = sbr.rel (%p206) target = $region12
      $region11: #{tpu_custom_call.1} parent=5 // pred_region
        %s210 = ssub.s32 %s18, 1
        // Predicated region
        $region13: #{tpu_custom_call.1} parent=11 // pred_check
          %p211 = pneg %p65
        $region14: #{tpu_custom_call.1} parent=11 // pred_check_branch
          %213 = sbr.rel (%p211) target = $region16
        $region15: #{tpu_custom_call.1} parent=11 // pred_region
          _
        $region16: #{tpu_custom_call.1} parent=11 // pred_fallthru
          _
        // Predicated region
        $region17: #{tpu_custom_call.1} parent=11 // pred_check
          %p214 = pneg %p86
        $region18: #{tpu_custom_call.1} parent=11 // pred_check_branch
          %216 = sbr.rel (%p214) target = $region20
        $region19: #{tpu_custom_call.1} parent=11 // pred_region
          _
        $region20: #{tpu_custom_call.1} parent=11 // pred_fallthru
          _
        // Predicated region
        $region21: #{tpu_custom_call.1} parent=11 // pred_check
          %p217 = pneg %p107
        $region22: #{tpu_custom_call.1} parent=11 // pred_check_branch
          %219 = sbr.rel (%p217) target = $region24
        $region23: #{tpu_custom_call.1} parent=11 // pred_region
          _
        $region24: #{tpu_custom_call.1} parent=11 // pred_fallthru
          _
        // Predicated region
        $region25: #{tpu_custom_call.1} parent=11 // pred_check
          %p220 = pneg %p128
        $region26: #{tpu_custom_call.1} parent=11 // pred_check_branch
          %222 = sbr.rel (%p220) target = $region28
        $region27: #{tpu_custom_call.1} parent=11 // pred_region
          _
        $region28: #{tpu_custom_call.1} parent=11 // pred_fallthru
          _
        // Predicated region
        $region29: #{tpu_custom_call.1} parent=11 // pred_check
          %p223 = pneg %p149
        $region30: #{tpu_custom_call.1} parent=11 // pred_check_branch
          %225 = sbr.rel (%p223) target = $region32
        $region31: #{tpu_custom_call.1} parent=11 // pred_region
          _
        $region32: #{tpu_custom_call.1} parent=11 // pred_fallthru
          _
        // Predicated region
        $region33: #{tpu_custom_call.1} parent=11 // pred_check
          %p226 = pneg %p170
        $region34: #{tpu_custom_call.1} parent=11 // pred_check_branch
          %228 = sbr.rel (%p226) target = $region36
        $region35: #{tpu_custom_call.1} parent=11 // pred_region
          _
        $region36: #{tpu_custom_call.1} parent=11 // pred_fallthru
          _
      $region12: #{tpu_custom_call.1} parent=5 // pred_fallthru
        _
      %p229 = scmp.lt.s32.totalorder %s18, 3
      // Predicated region
      $region37: #{tpu_custom_call.1} parent=5 // pred_check
        %p230 = pneg %p229
      $region38: #{tpu_custom_call.1} parent=5 // pred_check_branch
        %232 = sbr.rel (%p230) target = $region40
      $region39: #{tpu_custom_call.1} parent=5 // pred_region
        // Predicated region
        $region41: #{tpu_custom_call.1} parent=39 // pred_check
          %p233 = pneg %p38
        $region42: #{tpu_custom_call.1} parent=39 // pred_check_branch
          %235 = sbr.rel (%p233) target = $region44
        $region43: #{tpu_custom_call.1} parent=39 // pred_region
          %s236 = smul.u32 32, %s18
          %p237 = scmp.lt.s32.totalorder %s236, 95
          %s238 = scalar_select %p237, %s236, 95
          %s239 = smul.addr %s238, 8
          %s240 = scalar_lea.vmem %s0, %s239
          %s241 = smul.u32 32, %s18
        $region44: #{tpu_custom_call.1} parent=39 // pred_fallthru
          _
      $region40: #{tpu_custom_call.1} parent=5 // pred_fallthru
        _
      %p242 = scmp.le.s32.totalorder 1, %s18
      %p243 = scmp.lt.s32.totalorder %s18, 4
      %p244 = pnand %p242, %p243
      %p245 = pneg %p244
      // Predicated region
      $region45: #{tpu_custom_call.1} parent=5 // pred_check
        _
      $region46: #{tpu_custom_call.1} parent=5 // pred_check_branch
        %247 = sbr.rel (%p244) target = $region48
      $region47: #{tpu_custom_call.1} parent=5 // pred_region
        %s248 = ssub.s32 %s18, 1
        %s249 = smul.u32 32, %s23
        %p250 = scmp.lt.s32.totalorder %s249, 95
        %s251 = scalar_select %p250, %s249, 95
        %s252 = smul.addr %s251, 8
        %s253 = scalar_lea.vmem %s0, %s252
        %p254 = pneg %p44
        %p255 = pneg %p41
        %p256 = pneg %p65
        %p257 = pneg %p62
        %p258 = pneg %p86
        %p259 = pneg %p83
        %p260 = pneg %p107
        %p261 = pneg %p104
        %p262 = pneg %p128
        %p263 = pneg %p125
        %p264 = pneg %p149
        %p265 = pneg %p146
        %p266 = pneg %p170
        %p267 = pneg %p167
        %p268 = pneg %p196
        %p269 = pneg %p193
        %s270 = sand.u32 %s183, 1
        %s271 = scalar_lea.sflag [#allocation4], %s270
        %s272 = sand.u32 %s183, 1
        %s273 = smul.addr %s272, 2
        %s274 = scalar_lea.vmem [#allocation3], %s273
        %s275 = smul.u32 32, %s23
        %p276 = scmp.lt.s32.totalorder %s275, 95
        %s277 = scalar_select %p276, %s275, 95
        %s278 = smul.addr %s277, 8
        %s279 = scalar_lea.vmem %s0, %s278
        %s280 = smul.u32 32, %s23
        %s281 = smul.u32 2, %s23
        %v282 = vld [vmem:[%s2] sm:$0xff]
        %v283 = vld [vmem:[%s2 + $0x8] sm:$0xff]
        %v284 = vld [vmem:[%s2 + $0x10] sm:$0xff]
        %v285 = vld [vmem:[%s2 + $0x18] sm:$0xff]
        %v286 = vld [vmem:[%s2 + $0x20] sm:$0xff]
        %v287 = vld [vmem:[%s2 + $0x28] sm:$0xff]
        %v288 = vld [vmem:[%s2 + $0x30] sm:$0xff]
        %v289 = vld [vmem:[%s2 + $0x38] sm:$0xff]
        %v290 = vld [vmem:[%s2 + $0x40] sm:$0xff]
        %v291 = vld [vmem:[%s2 + $0x48] sm:$0xff]
        %v292 = vld [vmem:[%s2 + $0x50] sm:$0xff]
        %v293 = vld [vmem:[%s2 + $0x58] sm:$0xff]
        %v294 = vld [vmem:[%s2 + $0x60] sm:$0xff]
        %v295 = vld [vmem:[%s2 + $0x68] sm:$0xff]
        %v296 = vld [vmem:[%s2 + $0x70] sm:$0xff]
        %v297 = vld [vmem:[%s2 + $0x78] sm:$0xff]
        %299 = vset.pattern.permute.xlu0 0
        %300 = vperm.xlu0 %299, %v282
        %v301 = vpop.permute.xlu0 %300
        %304 = vset.pattern.permute.xlu0 0
        %305 = vperm.xlu0 %304, %v283
        %v306 = vpop.permute.xlu0 %305
        %309 = vset.pattern.permute.xlu0 0
        %310 = vperm.xlu0 %309, %v284
        %v311 = vpop.permute.xlu0 %310
        %314 = vset.pattern.permute.xlu0 0
        %315 = vperm.xlu0 %314, %v285
        %v316 = vpop.permute.xlu0 %315
        %319 = vset.pattern.permute.xlu0 0
        %320 = vperm.xlu0 %319, %v286
        %v321 = vpop.permute.xlu0 %320
        %324 = vset.pattern.permute.xlu0 0
        %325 = vperm.xlu0 %324, %v287
        %v326 = vpop.permute.xlu0 %325
        %329 = vset.pattern.permute.xlu0 0
        %330 = vperm.xlu0 %329, %v288
        %v331 = vpop.permute.xlu0 %330
        %334 = vset.pattern.permute.xlu0 0
        %335 = vperm.xlu0 %334, %v289
        %v336 = vpop.permute.xlu0 %335
        %339 = vset.pattern.permute.xlu0 0
        %340 = vperm.xlu0 %339, %v290
        %v341 = vpop.permute.xlu0 %340
        %344 = vset.pattern.permute.xlu0 0
        %345 = vperm.xlu0 %344, %v291
        %v346 = vpop.permute.xlu0 %345
        %349 = vset.pattern.permute.xlu0 0
        %350 = vperm.xlu0 %349, %v292
        %v351 = vpop.permute.xlu0 %350
        %354 = vset.pattern.permute.xlu0 0
        %355 = vperm.xlu0 %354, %v293
        %v356 = vpop.permute.xlu0 %355
        %359 = vset.pattern.permute.xlu0 0
        %360 = vperm.xlu0 %359, %v294
        %v361 = vpop.permute.xlu0 %360
        %364 = vset.pattern.permute.xlu0 0
        %365 = vperm.xlu0 %364, %v295
        %v366 = vpop.permute.xlu0 %365
        %369 = vset.pattern.permute.xlu0 0
        %370 = vperm.xlu0 %369, %v296
        %v371 = vpop.permute.xlu0 %370
        %374 = vset.pattern.permute.xlu0 0
        %375 = vperm.xlu0 %374, %v297
        %v376 = vpop.permute.xlu0 %375
        %v378 = vld [vmem:[%s4] sm:$0xff]
        %v379 = vld [vmem:[%s4 + $0x8] sm:$0xff]
        %v380 = vld [vmem:[%s4 + $0x10] sm:$0xff]
        %v381 = vld [vmem:[%s4 + $0x18] sm:$0xff]
        %383 = vset.pattern.permute.xlu0 0
        %384 = vperm.xlu0 %383, %v378
        %v385 = vpop.permute.xlu0 %384
        %388 = vset.pattern.permute.xlu0 0
        %389 = vperm.xlu0 %388, %v379
        %v390 = vpop.permute.xlu0 %389
        %393 = vset.pattern.permute.xlu0 0
        %394 = vperm.xlu0 %393, %v380
        %v395 = vpop.permute.xlu0 %394
        %398 = vset.pattern.permute.xlu0 0
        %399 = vperm.xlu0 %398, %v381
        %v400 = vpop.permute.xlu0 %399
        %v402 = vld [vmem:[#allocation2] sm:$0x1]
        %404 = vset.pattern.permute.xlu0 0
        %405 = vperm.xlu0 %404, %v402
        %v406 = vpop.permute.xlu0 %405
        %v408 = vlaneseq
        %v409 = vshrl.u32 %v408, 7
        %v410 = vsub.s32 0, %v409
        %v411 = vrot.slane %v406, %v410
        %v412 = vld [vmem:[%s5] sm:$0xff]
        %v413 = vld [vmem:[%s5 + $0x8] sm:$0xff]
        %v414 = vld [vmem:[%s5 + $0x10] sm:$0xff]
        %v415 = vld [vmem:[%s5 + $0x18] sm:$0xff]
        %417 = vset.pattern.permute.xlu0 0
        %418 = vperm.xlu0 %417, %v412
        %v419 = vpop.permute.xlu0 %418
        %422 = vset.pattern.permute.xlu0 0
        %423 = vperm.xlu0 %422, %v413
        %v424 = vpop.permute.xlu0 %423
        %427 = vset.pattern.permute.xlu0 0
        %428 = vperm.xlu0 %427, %v414
        %v429 = vpop.permute.xlu0 %428
        %432 = vset.pattern.permute.xlu0 0
        %433 = vperm.xlu0 %432, %v415
        %v434 = vpop.permute.xlu0 %433
        %v436 = vld [vmem:[%s279] sm:$0xff]
        %v437 = vld [vmem:[%s279 + $0x8] sm:$0xff]
        %v438 = vld [vmem:[%s279 + $0x10] sm:$0xff]
        %v439 = vld [vmem:[%s279 + $0x18] sm:$0xff]
        %v440 = vld [vmem:[%s279 + $0x20] sm:$0xff]
        %v441 = vld [vmem:[%s279 + $0x28] sm:$0xff]
        %v442 = vld [vmem:[%s279 + $0x30] sm:$0xff]
        %v443 = vld [vmem:[%s279 + $0x38] sm:$0xff]
        %v444 = vld [vmem:[%s279 + $0x40] sm:$0xff]
        %v445 = vld [vmem:[%s279 + $0x48] sm:$0xff]
        %v446 = vld [vmem:[%s279 + $0x50] sm:$0xff]
        %v447 = vld [vmem:[%s279 + $0x58] sm:$0xff]
        %v448 = vld [vmem:[%s279 + $0x60] sm:$0xff]
        %v449 = vld [vmem:[%s279 + $0x68] sm:$0xff]
        %v450 = vld [vmem:[%s279 + $0x70] sm:$0xff]
        %v451 = vld [vmem:[%s279 + $0x78] sm:$0xff]
        %v452 = vld [vmem:[%s1] sm:$0xff]
        %v453 = vld [vmem:[%s1 + $0x8] sm:$0xff]
        %v454 = vld [vmem:[%s1 + $0x10] sm:$0xff]
        %v455 = vld [vmem:[%s1 + $0x18] sm:$0xff]
        %v456 = vld [vmem:[%s1 + $0x20] sm:$0xff]
        %v457 = vld [vmem:[%s1 + $0x28] sm:$0xff]
        %v458 = vld [vmem:[%s1 + $0x30] sm:$0xff]
        %v459 = vld [vmem:[%s1 + $0x38] sm:$0xff]
        %v460 = vld [vmem:[%s1 + $0x40] sm:$0xff]
        %v461 = vld [vmem:[%s1 + $0x48] sm:$0xff]
        %v462 = vld [vmem:[%s1 + $0x50] sm:$0xff]
        %v463 = vld [vmem:[%s1 + $0x58] sm:$0xff]
        %v464 = vld [vmem:[%s1 + $0x60] sm:$0xff]
        %v465 = vld [vmem:[%s1 + $0x68] sm:$0xff]
        %v466 = vld [vmem:[%s1 + $0x70] sm:$0xff]
        %v467 = vld [vmem:[%s1 + $0x78] sm:$0xff]
        %vm468 = vcmask 89088
        %v470 = vsel %vm468, %v452, 0
        %v473 = vsel %vm468, %v453, 0
        %v476 = vsel %vm468, %v454, 0
        %v479 = vsel %vm468, %v455, 0
        %v482 = vsel %vm468, %v456, 0
        %v485 = vsel %vm468, %v457, 0
        %v488 = vsel %vm468, %v458, 0
        %v491 = vsel %vm468, %v459, 0
        %v494 = vsel %vm468, %v460, 0
        %v497 = vsel %vm468, %v461, 0
        %v500 = vsel %vm468, %v462, 0
        %v503 = vsel %vm468, %v463, 0
        %v506 = vsel %vm468, %v464, 0
        %v509 = vsel %vm468, %v465, 0
        %v512 = vsel %vm468, %v466, 0
        %v515 = vsel %vm468, %v467, 0
        %v518 = vsel %vm468, %v436, 0
        %v521 = vsel %vm468, %v437, 0
        %v524 = vsel %vm468, %v438, 0
        %v527 = vsel %vm468, %v439, 0
        %v530 = vsel %vm468, %v440, 0
        %v533 = vsel %vm468, %v441, 0
        %v536 = vsel %vm468, %v442, 0
        %v539 = vsel %vm468, %v443, 0
        %v542 = vsel %vm468, %v444, 0
        %v545 = vsel %vm468, %v445, 0
        %v548 = vsel %vm468, %v446, 0
        %v551 = vsel %vm468, %v447, 0
        %v554 = vsel %vm468, %v448, 0
        %v557 = vsel %vm468, %v449, 0
        %v560 = vsel %vm468, %v450, 0
        %v563 = vsel %vm468, %v451, 0
        %565 = vmatprep.subr.mxu0 0.0
        %566 = vmatpush1.xpose.msra.mxu0 %v518
        %567 = vmatprep.subr.mxu0 0.0
        %568 = vmatpush1.xpose.msra.mxu0 %v521
        %569 = vmatprep.subr.mxu0 0.0
        %570 = vmatpush1.xpose.msra.mxu0 %v524
        %571 = vmatprep.subr.mxu0 0.0
        %572 = vmatpush1.xpose.msra.mxu0 %v527
        %573 = vmatprep.subr.mxu0 0.0
        %574 = vmatpush1.xpose.msra.mxu0 %v530
        %575 = vmatprep.subr.mxu0 0.0
        %576 = vmatpush1.xpose.msra.mxu0 %v533
        %577 = vmatprep.subr.mxu0 0.0
        %578 = vmatpush1.xpose.msra.mxu0 %v536
        %579 = vmatprep.subr.mxu0 0.0
        %580 = vmatpush1.xpose.msra.mxu0 %v539
        %581 = vmatprep.subr.mxu0 0.0
        %582 = vmatpush1.xpose.msra.mxu0 %v542
        %583 = vmatprep.subr.mxu0 0.0
        %584 = vmatpush1.xpose.msra.mxu0 %v545
        %585 = vmatprep.subr.mxu0 0.0
        %586 = vmatpush1.xpose.msra.mxu0 %v548
        %587 = vmatprep.subr.mxu0 0.0
        %588 = vmatpush1.xpose.msra.mxu0 %v551
        %589 = vmatprep.subr.mxu0 0.0
        %590 = vmatpush1.xpose.msra.mxu0 %v554
        %591 = vmatprep.subr.mxu0 0.0
        %592 = vmatpush1.xpose.msra.mxu0 %v557
        %593 = vmatprep.subr.mxu0 0.0
        %594 = vmatpush1.xpose.msra.mxu0 %v560
        %595 = vmatprep.subr.mxu0 0.0
        %596 = vmatpush1.xpose.msra.mxu0 %v563
        %597 = vmatprep.subr.mxu0 0.0
        %598 = vmatpush1.xpose.msra.mxu0 0.0
        %599 = vmatprep.subr.mxu0 0.0
        %600 = vmatpush1.xpose.msra.mxu0 0.0
        %601 = vmatprep.subr.mxu0 0.0
        %602 = vmatpush1.xpose.msra.mxu0 0.0
        %603 = vmatprep.subr.mxu0 0.0
        %604 = vmatpush1.xpose.msra.mxu0 0.0
        %605 = vmatprep.subr.mxu0 0.0
        %606 = vmatpush1.xpose.msra.mxu0 0.0
        %607 = vmatprep.subr.mxu0 0.0
        %608 = vmatpush1.xpose.msra.mxu0 0.0
        %609 = vmatprep.subr.mxu0 0.0
        %610 = vmatpush1.xpose.msra.mxu0 0.0
        %611 = vmatprep.subr.mxu0 0.0
        %612 = vmatpush1.xpose.msra.mxu0 0.0
        %613 = vmatprep.subr.mxu0 0.0
        %614 = vmatpush1.xpose.msra.mxu0 0.0
        %615 = vmatprep.subr.mxu0 0.0
        %616 = vmatpush1.xpose.msra.mxu0 0.0
        %617 = vmatprep.subr.mxu0 0.0
        %618 = vmatpush1.xpose.msra.mxu0 0.0
        %619 = vmatprep.subr.mxu0 0.0
        %620 = vmatpush1.xpose.msra.mxu0 0.0
        %621 = vmatprep.subr.mxu0 0.0
        %622 = vmatpush1.xpose.msra.mxu0 0.0
        %623 = vmatprep.subr.mxu0 0.0
        %624 = vmatpush1.xpose.msra.mxu0 0.0
        %625 = vmatprep.subr.mxu0 0.0
        %626 = vmatpush1.xpose.msra.mxu0 0.0
        %627 = vmatprep.subr.mxu0 0.0
        %628 = vmatpush1.xpose.msra.mxu0 0.0
        %629 = vmatprep.mubr.f32.mxu0 0.0
        %630 = vmatmul.mubr.f32.gmra.mrb[0].mxu0 %v470
        %v631 = vpop.f32.mrb[0].mxu0
        %v632 = vadd.f32 %v301, %v631
        %v633 = vpop.f32.mrb[0].mxu0
        %634 = vmatprep.mubr.f32.mxu0 0.0
        %635 = vmatmul.mubr.f32.gmra.mrb[0].mxu0 %v473
        %v636 = vpop.f32.mrb[0].mxu0
        %v637 = vadd.f32 %v306, %v636
        %v638 = vpop.f32.mrb[0].mxu0
        %639 = vmatprep.mubr.f32.mxu0 0.0
        %640 = vmatmul.mubr.f32.gmra.mrb[0].mxu0 %v476
        %v641 = vpop.f32.mrb[0].mxu0
        %v642 = vadd.f32 %v311, %v641
        %v643 = vpop.f32.mrb[0].mxu0
        %644 = vmatprep.mubr.f32.mxu0 0.0
        %645 = vmatmul.mubr.f32.gmra.mrb[0].mxu0 %v479
        %v646 = vpop.f32.mrb[0].mxu0
        %v647 = vadd.f32 %v316, %v646
        %v648 = vpop.f32.mrb[0].mxu0
        %649 = vmatprep.mubr.f32.mxu0 0.0
        %650 = vmatmul.mubr.f32.gmra.mrb[0].mxu0 %v482
        %v651 = vpop.f32.mrb[0].mxu0
        %v652 = vadd.f32 %v321, %v651
        %v653 = vpop.f32.mrb[0].mxu0
        %654 = vmatprep.mubr.f32.mxu0 0.0
        %655 = vmatmul.mubr.f32.gmra.mrb[0].mxu0 %v485
        %v656 = vpop.f32.mrb[0].mxu0
        %v657 = vadd.f32 %v326, %v656
        %v658 = vpop.f32.mrb[0].mxu0
        %659 = vmatprep.mubr.f32.mxu0 0.0
        %660 = vmatmul.mubr.f32.gmra.mrb[0].mxu0 %v488
        %v661 = vpop.f32.mrb[0].mxu0
        %v662 = vadd.f32 %v331, %v661
        %v663 = vpop.f32.mrb[0].mxu0
        %664 = vmatprep.mubr.f32.mxu0 0.0
        %665 = vmatmul.mubr.f32.gmra.mrb[0].mxu0 %v491
        %v666 = vpop.f32.mrb[0].mxu0
        %v667 = vadd.f32 %v336, %v666
        %v668 = vpop.f32.mrb[0].mxu0
        %669 = vmatprep.mubr.f32.mxu0 0.0
        %670 = vmatmul.mubr.f32.gmra.mrb[0].mxu0 %v494
        %v671 = vpop.f32.mrb[0].mxu0
        %v672 = vadd.f32 %v341, %v671
        %v673 = vpop.f32.mrb[0].mxu0
        %674 = vmatprep.mubr.f32.mxu0 0.0
        %675 = vmatmul.mubr.f32.gmra.mrb[0].mxu0 %v497
        %v676 = vpop.f32.mrb[0].mxu0
        %v677 = vadd.f32 %v346, %v676
        %v678 = vpop.f32.mrb[0].mxu0
        %679 = vmatprep.mubr.f32.mxu0 0.0
        %680 = vmatmul.mubr.f32.gmra.mrb[0].mxu0 %v500
        %v681 = vpop.f32.mrb[0].mxu0
        %v682 = vadd.f32 %v351, %v681
        %v683 = vpop.f32.mrb[0].mxu0
        %684 = vmatprep.mubr.f32.mxu0 0.0
        %685 = vmatmul.mubr.f32.gmra.mrb[0].mxu0 %v503
        %v686 = vpop.f32.mrb[0].mxu0
        %v687 = vadd.f32 %v356, %v686
        %v688 = vpop.f32.mrb[0].mxu0
        %689 = vmatprep.mubr.f32.mxu0 0.0
        %690 = vmatmul.mubr.f32.gmra.mrb[0].mxu0 %v506
        %v691 = vpop.f32.mrb[0].mxu0
        %v692 = vadd.f32 %v361, %v691
        %v693 = vpop.f32.mrb[0].mxu0
        %694 = vmatprep.mubr.f32.mxu0 0.0
        %695 = vmatmul.mubr.f32.gmra.mrb[0].mxu0 %v509
        %v696 = vpop.f32.mrb[0].mxu0
        %v697 = vadd.f32 %v366, %v696
        %v698 = vpop.f32.mrb[0].mxu0
        %699 = vmatprep.mubr.f32.mxu0 0.0
        %700 = vmatmul.mubr.f32.gmra.mrb[0].mxu0 %v512
        %v701 = vpop.f32.mrb[0].mxu0
        %v702 = vadd.f32 %v371, %v701
        %v703 = vpop.f32.mrb[0].mxu0
        %704 = vmatprep.mubr.f32.mxu0 0.0
        %705 = vmatmul.mubr.f32.gmra.mrb[0].mxu0 %v515
        %v706 = vpop.f32.mrb[0].mxu0
        %v707 = vadd.f32 %v376, %v706
        %v708 = vpop.f32.mrb[0].mxu0
        %709 = vdwg.mxu0
        %v710 = vmax.f32 %v632, 0.0
        %v711 = vmax.f32 %v637, 0.0
        %v712 = vmax.f32 %v642, 0.0
        %v713 = vmax.f32 %v647, 0.0
        %v714 = vmax.f32 %v652, 0.0
        %v715 = vmax.f32 %v657, 0.0
        %v716 = vmax.f32 %v662, 0.0
        %v717 = vmax.f32 %v667, 0.0
        %v718 = vmax.f32 %v672, 0.0
        %v719 = vmax.f32 %v677, 0.0
        %v720 = vmax.f32 %v682, 0.0
        %v721 = vmax.f32 %v687, 0.0
        %v722 = vmax.f32 %v692, 0.0
        %v723 = vmax.f32 %v697, 0.0
        %v724 = vmax.f32 %v702, 0.0
        %v725 = vmax.f32 %v707, 0.0
        %v726 = vld [vmem:[%s3] sm:$0xff]
        %v727 = vld [vmem:[%s3 + $0x8] sm:$0xff]
        %v728 = vld [vmem:[%s3 + $0x10] sm:$0xff]
        %v729 = vld [vmem:[%s3 + $0x18] sm:$0xff]
        %730 = vmatprep.subr.mxu0 0.0
        %731 = vmatpush1.msra.mxu0 %v710
        %732 = vmatprep.subr.mxu0 0.0
        %733 = vmatpush1.msra.mxu0 %v711
        %734 = vmatprep.subr.mxu0 0.0
        %735 = vmatpush1.msra.mxu0 %v712
        %736 = vmatprep.subr.mxu0 0.0
        %737 = vmatpush1.msra.mxu0 %v713
        %738 = vmatprep.subr.mxu0 0.0
        %739 = vmatpush1.msra.mxu0 %v714
        %740 = vmatprep.subr.mxu0 0.0
        %741 = vmatpush1.msra.mxu0 %v715
        %742 = vmatprep.subr.mxu0 0.0
        %743 = vmatpush1.msra.mxu0 %v716
        %744 = vmatprep.subr.mxu0 0.0
        %745 = vmatpush1.msra.mxu0 %v717
        %746 = vmatprep.subr.mxu0 0.0
        %747 = vmatpush1.msra.mxu0 %v718
        %748 = vmatprep.subr.mxu0 0.0
        %749 = vmatpush1.msra.mxu0 %v719
        %750 = vmatprep.subr.mxu0 0.0
        %751 = vmatpush1.msra.mxu0 %v720
        %752 = vmatprep.subr.mxu0 0.0
        %753 = vmatpush1.msra.mxu0 %v721
        %754 = vmatprep.subr.mxu0 0.0
        %755 = vmatpush1.msra.mxu0 %v722
        %756 = vmatprep.subr.mxu0 0.0
        %757 = vmatpush1.msra.mxu0 %v723
        %758 = vmatprep.subr.mxu0 0.0
        %759 = vmatpush1.msra.mxu0 %v724
        %760 = vmatprep.subr.mxu0 0.0
        %761 = vmatpush1.msra.mxu0 %v725
        %762 = vmatprep.subr.mxu0 0.0
        %763 = vmatpush1.msra.mxu0 0.0
        %764 = vmatprep.subr.mxu0 0.0
        %765 = vmatpush1.msra.mxu0 0.0
        %766 = vmatprep.subr.mxu0 0.0
        %767 = vmatpush1.msra.mxu0 0.0
        %768 = vmatprep.subr.mxu0 0.0
        %769 = vmatpush1.msra.mxu0 0.0
        %770 = vmatprep.subr.mxu0 0.0
        %771 = vmatpush1.msra.mxu0 0.0
        %772 = vmatprep.subr.mxu0 0.0
        %773 = vmatpush1.msra.mxu0 0.0
        %774 = vmatprep.subr.mxu0 0.0
        %775 = vmatpush1.msra.mxu0 0.0
        %776 = vmatprep.subr.mxu0 0.0
        %777 = vmatpush1.msra.mxu0 0.0
        %778 = vmatprep.subr.mxu0 0.0
        %779 = vmatpush1.msra.mxu0 0.0
        %780 = vmatprep.subr.mxu0 0.0
        %781 = vmatpush1.msra.mxu0 0.0
        %782 = vmatprep.subr.mxu0 0.0
        %783 = vmatpush1.msra.mxu0 0.0
        %784 = vmatprep.subr.mxu0 0.0
        %785 = vmatpush1.msra.mxu0 0.0
        %786 = vmatprep.subr.mxu0 0.0
        %787 = vmatpush1.msra.mxu0 0.0
        %788 = vmatprep.subr.mxu0 0.0
        %789 = vmatpush1.msra.mxu0 0.0
        %790 = vmatprep.subr.mxu0 0.0
        %791 = vmatpush1.msra.mxu0 0.0
        %792 = vmatprep.subr.mxu0 0.0
        %793 = vmatpush1.msra.mxu0 0.0
        %794 = vmatprep.mubr.f32.mxu0 0.0
        %795 = vmatmul.mubr.f32.gmra.mrb[0].mxu0 %v726
        %v796 = vpop.f32.mrb[0].mxu0
        %v797 = vadd.f32 %v385, %v796
        %v798 = vpop.f32.mrb[0].mxu0
        %799 = vmatprep.mubr.f32.mxu0 0.0
        %800 = vmatmul.mubr.f32.gmra.mrb[0].mxu0 %v727
        %v801 = vpop.f32.mrb[0].mxu0
        %v802 = vadd.f32 %v390, %v801
        %v803 = vpop.f32.mrb[0].mxu0
        %804 = vmatprep.mubr.f32.mxu0 0.0
        %805 = vmatmul.mubr.f32.gmra.mrb[0].mxu0 %v728
        %v806 = vpop.f32.mrb[0].mxu0
        %v807 = vadd.f32 %v395, %v806
        %v808 = vpop.f32.mrb[0].mxu0
        %809 = vmatprep.mubr.f32.mxu0 0.0
        %810 = vmatmul.mubr.f32.gmra.mrb[0].mxu0 %v729
        %v811 = vpop.f32.mrb[0].mxu0
        %v812 = vadd.f32 %v400, %v811
        %v813 = vpop.f32.mrb[0].mxu0
        %814 = vdwg.mxu0
        %v815 = vmax.f32 %v797, 0.0
        %v816 = vmax.f32 %v802, 0.0
        %v817 = vmax.f32 %v807, 0.0
        %v818 = vmax.f32 %v812, 0.0
        %v819 = vmul.f32 %v419, %v815
        %v820 = vmul.f32 %v424, %v816
        %v821 = vmul.f32 %v429, %v817
        %v822 = vmul.f32 %v434, %v818
        %v823 = vadd.f32 %v819, %v820
        %v824 = vadd.f32 %v823, %v821
        %v825 = vadd.f32 %v824, %v822
        %v826 = vrot.slane %v825, 4
        %v827 = vadd.f32 %v825, %v826
        %v828 = vrot.slane %v827, 2
        %v829 = vadd.f32 %v827, %v828
        %v830 = vrot.slane %v829, 1
        %v831 = vadd.f32 %v829, %v830
        %v832 = vadd.f32 %v831, %v411
        %v833 = vlaneseq
        %vm834 = vcmp.ge.s32.totalorder %v833, 0
        %vm835 = vcmp.lt.s32.totalorder %v833, 128
        %vm836 = vmand %vm834, %vm835
        %837 = vst.msk [vmem:[%s274] sm:$0x1] %vm836, %v832
        %s838 = scalar_lea.vmem %s279, 128
        %v839 = vld [vmem:[%s838] sm:$0xff]
        %v840 = vld [vmem:[%s838 + $0x8] sm:$0xff]
        %v841 = vld [vmem:[%s838 + $0x10] sm:$0xff]
        %v842 = vld [vmem:[%s838 + $0x18] sm:$0xff]
        %v843 = vld [vmem:[%s838 + $0x20] sm:$0xff]
        %v844 = vld [vmem:[%s838 + $0x28] sm:$0xff]
        %v845 = vld [vmem:[%s838 + $0x30] sm:$0xff]
        %v846 = vld [vmem:[%s838 + $0x38] sm:$0xff]
        %v847 = vld [vmem:[%s838 + $0x40] sm:$0xff]
        %v848 = vld [vmem:[%s838 + $0x48] sm:$0xff]
        %v849 = vld [vmem:[%s838 + $0x50] sm:$0xff]
        %v850 = vld [vmem:[%s838 + $0x58] sm:$0xff]
        %v851 = vld [vmem:[%s838 + $0x60] sm:$0xff]
        %v852 = vld [vmem:[%s838 + $0x68] sm:$0xff]
        %v853 = vld [vmem:[%s838 + $0x70] sm:$0xff]
        %v854 = vld [vmem:[%s838 + $0x78] sm:$0xff]
        %v855 = vld [vmem:[%s1] sm:$0xff]
        %v856 = vld [vmem:[%s1 + $0x8] sm:$0xff]
        %v857 = vld [vmem:[%s1 + $0x10] sm:$0xff]
        %v858 = vld [vmem:[%s1 + $0x18] sm:$0xff]
        %v859 = vld [vmem:[%s1 + $0x20] sm:$0xff]
        %v860 = vld [vmem:[%s1 + $0x28] sm:$0xff]
        %v861 = vld [vmem:[%s1 + $0x30] sm:$0xff]
        %v862 = vld [vmem:[%s1 + $0x38] sm:$0xff]
        %v863 = vld [vmem:[%s1 + $0x40] sm:$0xff]
        %v864 = vld [vmem:[%s1 + $0x48] sm:$0xff]
        %v865 = vld [vmem:[%s1 + $0x50] sm:$0xff]
        %v866 = vld [vmem:[%s1 + $0x58] sm:$0xff]
        %v867 = vld [vmem:[%s1 + $0x60] sm:$0xff]
        %v868 = vld [vmem:[%s1 + $0x68] sm:$0xff]
        %v869 = vld [vmem:[%s1 + $0x70] sm:$0xff]
        %v870 = vld [vmem:[%s1 + $0x78] sm:$0xff]
        %v872 = vsel %vm468, %v855, 0
        %v875 = vsel %vm468, %v856, 0
        %v878 = vsel %vm468, %v857, 0
        %v881 = vsel %vm468, %v858, 0
        %v884 = vsel %vm468, %v859, 0
        %v887 = vsel %vm468, %v860, 0
        %v890 = vsel %vm468, %v861, 0
        %v893 = vsel %vm468, %v862, 0
        %v896 = vsel %vm468, %v863, 0
        %v899 = vsel %vm468, %v864, 0
        %v902 = vsel %vm468, %v865, 0
        %v905 = vsel %vm468, %v866, 0
        %v908 = vsel %vm468, %v867, 0
        %v911 = vsel %vm468, %v868, 0
        %v914 = vsel %vm468, %v869, 0
        %v917 = vsel %vm468, %v870, 0
        %v920 = vsel %vm468, %v839, 0
        %v923 = vsel %vm468, %v840, 0
        %v926 = vsel %vm468, %v841, 0
        %v929 = vsel %vm468, %v842, 0
        %v932 = vsel %vm468, %v843, 0
        %v935 = vsel %vm468, %v844, 0
        %v938 = vsel %vm468, %v845, 0
        %v941 = vsel %vm468, %v846, 0
        %v944 = vsel %vm468, %v847, 0
        %v947 = vsel %vm468, %v848, 0
        %v950 = vsel %vm468, %v849, 0
        %v953 = vsel %vm468, %v850, 0
        %v956 = vsel %vm468, %v851, 0
        %v959 = vsel %vm468, %v852, 0
        %v962 = vsel %vm468, %v853, 0
        %v965 = vsel %vm468, %v854, 0
        %967 = vmatprep.subr.mxu0 0.0
        %968 = vmatpush1.xpose.msra.mxu0 %v920
        %969 = vmatprep.subr.mxu0 0.0
        %970 = vmatpush1.xpose.msra.mxu0 %v923
        %971 = vmatprep.subr.mxu0 0.0
        %972 = vmatpush1.xpose.msra.mxu0 %v926
        %973 = vmatprep.subr.mxu0 0.0
        %974 = vmatpush1.xpose.msra.mxu0 %v929
        %975 = vmatprep.subr.mxu0 0.0
        %976 = vmatpush1.xpose.msra.mxu0 %v932
        %977 = vmatprep.subr.mxu0 0.0
        %978 = vmatpush1.xpose.msra.mxu0 %v935
        %979 = vmatprep.subr.mxu0 0.0
        %980 = vmatpush1.xpose.msra.mxu0 %v938
        %981 = vmatprep.subr.mxu0 0.0
        %982 = vmatpush1.xpose.msra.mxu0 %v941
        %983 = vmatprep.subr.mxu0 0.0
        %984 = vmatpush1.xpose.msra.mxu0 %v944
        %985 = vmatprep.subr.mxu0 0.0
        %986 = vmatpush1.xpose.msra.mxu0 %v947
        %987 = vmatprep.subr.mxu0 0.0
        %988 = vmatpush1.xpose.msra.mxu0 %v950
        %989 = vmatprep.subr.mxu0 0.0
        %990 = vmatpush1.xpose.msra.mxu0 %v953
        %991 = vmatprep.subr.mxu0 0.0
        %992 = vmatpush1.xpose.msra.mxu0 %v956
        %993 = vmatprep.subr.mxu0 0.0
        %994 = vmatpush1.xpose.msra.mxu0 %v959
        %995 = vmatprep.subr.mxu0 0.0
        %996 = vmatpush1.xpose.msra.mxu0 %v962
        %997 = vmatprep.subr.mxu0 0.0
        %998 = vmatpush1.xpose.msra.mxu0 %v965
        %999 = vmatprep.subr.mxu0 0.0
        %1000 = vmatpush1.xpose.msra.mxu0 0.0
        %1001 = vmatprep.subr.mxu0 0.0
        %1002 = vmatpush1.xpose.msra.mxu0 0.0
        %1003 = vmatprep.subr.mxu0 0.0
        %1004 = vmatpush1.xpose.msra.mxu0 0.0
        %1005 = vmatprep.subr.mxu0 0.0
        %1006 = vmatpush1.xpose.msra.mxu0 0.0
        %1007 = vmatprep.subr.mxu0 0.0
        %1008 = vmatpush1.xpose.msra.mxu0 0.0
        %1009 = vmatprep.subr.mxu0 0.0
        %1010 = vmatpush1.xpose.msra.mxu0 0.0
        %1011 = vmatprep.subr.mxu0 0.0
        %1012 = vmatpush1.xpose.msra.mxu0 0.0
        %1013 = vmatprep.subr.mxu0 0.0
        %1014 = vmatpush1.xpose.msra.mxu0 0.0
        %1015 = vmatprep.subr.mxu0 0.0
        %1016 = vmatpush1.xpose.msra.mxu0 0.0
        %1017 = vmatprep.subr.mxu0 0.0
        %1018 = vmatpush1.xpose.msra.mxu0 0.0
        %1019 = vmatprep.subr.mxu0 0.0
        %1020 = vmatpush1.xpose.msra.mxu0 0.0
        %1021 = vmatprep.subr.mxu0 0.0
        %1022 = vmatpush1.xpose.msra.mxu0 0.0
        %1023 = vmatprep.subr.mxu0 0.0
        %1024 = vmatpush1.xpose.msra.mxu0 0.0
        %1025 = vmatprep.subr.mxu0 0.0
        %1026 = vmatpush1.xpose.msra.mxu0 0.0
        %1027 = vmatprep.subr.mxu0 0.0
        %1028 = vmatpush1.xpose.msra.mxu0 0.0
        %1029 = vmatprep.subr.mxu0 0.0
        %1030 = vmatpush1.xpose.msra.mxu0 0.0
        %1031 = vmatprep.mubr.f32.mxu0 0.0
        %1032 = vmatmul.mubr.f32.gmra.mrb[0].mxu0 %v872
        %v1033 = vpop.f32.mrb[0].mxu0
        %v1034 = vadd.f32 %v301, %v1033
        %v1035 = vpop.f32.mrb[0].mxu0
        %1036 = vmatprep.mubr.f32.mxu0 0.0
        %1037 = vmatmul.mubr.f32.gmra.mrb[0].mxu0 %v875
        %v1038 = vpop.f32.mrb[0].mxu0
        %v1039 = vadd.f32 %v306, %v1038
        %v1040 = vpop.f32.mrb[0].mxu0
        %1041 = vmatprep.mubr.f32.mxu0 0.0
        %1042 = vmatmul.mubr.f32.gmra.mrb[0].mxu0 %v878
        %v1043 = vpop.f32.mrb[0].mxu0
        %v1044 = vadd.f32 %v311, %v1043
        %v1045 = vpop.f32.mrb[0].mxu0
        %1046 = vmatprep.mubr.f32.mxu0 0.0
        %1047 = vmatmul.mubr.f32.gmra.mrb[0].mxu0 %v881
        %v1048 = vpop.f32.mrb[0].mxu0
        %v1049 = vadd.f32 %v316, %v1048
        %v1050 = vpop.f32.mrb[0].mxu0
        %1051 = vmatprep.mubr.f32.mxu0 0.0
        %1052 = vmatmul.mubr.f32.gmra.mrb[0].mxu0 %v884
        %v1053 = vpop.f32.mrb[0].mxu0
        %v1054 = vadd.f32 %v321, %v1053
        %v1055 = vpop.f32.mrb[0].mxu0
        %1056 = vmatprep.mubr.f32.mxu0 0.0
        %1057 = vmatmul.mubr.f32.gmra.mrb[0].mxu0 %v887
        %v1058 = vpop.f32.mrb[0].mxu0
        %v1059 = vadd.f32 %v326, %v1058
        %v1060 = vpop.f32.mrb[0].mxu0
        %1061 = vmatprep.mubr.f32.mxu0 0.0
        %1062 = vmatmul.mubr.f32.gmra.mrb[0].mxu0 %v890
        %v1063 = vpop.f32.mrb[0].mxu0
        %v1064 = vadd.f32 %v331, %v1063
        %v1065 = vpop.f32.mrb[0].mxu0
        %1066 = vmatprep.mubr.f32.mxu0 0.0
        %1067 = vmatmul.mubr.f32.gmra.mrb[0].mxu0 %v893
        %v1068 = vpop.f32.mrb[0].mxu0
        %v1069 = vadd.f32 %v336, %v1068
        %v1070 = vpop.f32.mrb[0].mxu0
        %1071 = vmatprep.mubr.f32.mxu0 0.0
        %1072 = vmatmul.mubr.f32.gmra.mrb[0].mxu0 %v896
        %v1073 = vpop.f32.mrb[0].mxu0
        %v1074 = vadd.f32 %v341, %v1073
        %v1075 = vpop.f32.mrb[0].mxu0
        %1076 = vmatprep.mubr.f32.mxu0 0.0
        %1077 = vmatmul.mubr.f32.gmra.mrb[0].mxu0 %v899
        %v1078 = vpop.f32.mrb[0].mxu0
        %v1079 = vadd.f32 %v346, %v1078
        %v1080 = vpop.f32.mrb[0].mxu0
        %1081 = vmatprep.mubr.f32.mxu0 0.0
        %1082 = vmatmul.mubr.f32.gmra.mrb[0].mxu0 %v902
        %v1083 = vpop.f32.mrb[0].mxu0
        %v1084 = vadd.f32 %v351, %v1083
        %v1085 = vpop.f32.mrb[0].mxu0
        %1086 = vmatprep.mubr.f32.mxu0 0.0
        %1087 = vmatmul.mubr.f32.gmra.mrb[0].mxu0 %v905
        %v1088 = vpop.f32.mrb[0].mxu0
        %v1089 = vadd.f32 %v356, %v1088
        %v1090 = vpop.f32.mrb[0].mxu0
        %1091 = vmatprep.mubr.f32.mxu0 0.0
        %1092 = vmatmul.mubr.f32.gmra.mrb[0].mxu0 %v908
        %v1093 = vpop.f32.mrb[0].mxu0
        %v1094 = vadd.f32 %v361, %v1093
        %v1095 = vpop.f32.mrb[0].mxu0
        %1096 = vmatprep.mubr.f32.mxu0 0.0
        %1097 = vmatmul.mubr.f32.gmra.mrb[0].mxu0 %v911
        %v1098 = vpop.f32.mrb[0].mxu0
        %v1099 = vadd.f32 %v366, %v1098
        %v1100 = vpop.f32.mrb[0].mxu0
        %1101 = vmatprep.mubr.f32.mxu0 0.0
        %1102 = vmatmul.mubr.f32.gmra.mrb[0].mxu0 %v914
        %v1103 = vpop.f32.mrb[0].mxu0
        %v1104 = vadd.f32 %v371, %v1103
        %v1105 = vpop.f32.mrb[0].mxu0
        %1106 = vmatprep.mubr.f32.mxu0 0.0
        %1107 = vmatmul.mubr.f32.gmra.mrb[0].mxu0 %v917
        %v1108 = vpop.f32.mrb[0].mxu0
        %v1109 = vadd.f32 %v376, %v1108
        %v1110 = vpop.f32.mrb[0].mxu0
        %1111 = vdwg.mxu0
        %v1112 = vmax.f32 %v1034, 0.0
        %v1113 = vmax.f32 %v1039, 0.0
        %v1114 = vmax.f32 %v1044, 0.0
        %v1115 = vmax.f32 %v1049, 0.0
        %v1116 = vmax.f32 %v1054, 0.0
        %v1117 = vmax.f32 %v1059, 0.0
        %v1118 = vmax.f32 %v1064, 0.0
        %v1119 = vmax.f32 %v1069, 0.0
        %v1120 = vmax.f32 %v1074, 0.0
        %v1121 = vmax.f32 %v1079, 0.0
        %v1122 = vmax.f32 %v1084, 0.0
        %v1123 = vmax.f32 %v1089, 0.0
        %v1124 = vmax.f32 %v1094, 0.0
        %v1125 = vmax.f32 %v1099, 0.0
        %v1126 = vmax.f32 %v1104, 0.0
        %v1127 = vmax.f32 %v1109, 0.0
        %v1128 = vld [vmem:[%s3] sm:$0xff]
        %v1129 = vld [vmem:[%s3 + $0x8] sm:$0xff]
        %v1130 = vld [vmem:[%s3 + $0x10] sm:$0xff]
        %v1131 = vld [vmem:[%s3 + $0x18] sm:$0xff]
        %1132 = vmatprep.subr.mxu0 0.0
        %1133 = vmatpush1.msra.mxu0 %v1112
        %1134 = vmatprep.subr.mxu0 0.0
        %1135 = vmatpush1.msra.mxu0 %v1113
        %1136 = vmatprep.subr.mxu0 0.0
        %1137 = vmatpush1.msra.mxu0 %v1114
        %1138 = vmatprep.subr.mxu0 0.0
        %1139 = vmatpush1.msra.mxu0 %v1115
        %1140 = vmatprep.subr.mxu0 0.0
        %1141 = vmatpush1.msra.mxu0 %v1116
        %1142 = vmatprep.subr.mxu0 0.0
        %1143 = vmatpush1.msra.mxu0 %v1117
        %1144 = vmatprep.subr.mxu0 0.0
        %1145 = vmatpush1.msra.mxu0 %v1118
        %1146 = vmatprep.subr.mxu0 0.0
        %1147 = vmatpush1.msra.mxu0 %v1119
        %1148 = vmatprep.subr.mxu0 0.0
        %1149 = vmatpush1.msra.mxu0 %v1120
        %1150 = vmatprep.subr.mxu0 0.0
        %1151 = vmatpush1.msra.mxu0 %v1121
        %1152 = vmatprep.subr.mxu0 0.0
        %1153 = vmatpush1.msra.mxu0 %v1122
        %1154 = vmatprep.subr.mxu0 0.0
        %1155 = vmatpush1.msra.mxu0 %v1123
        %1156 = vmatprep.subr.mxu0 0.0
        %1157 = vmatpush1.msra.mxu0 %v1124
        %1158 = vmatprep.subr.mxu0 0.0
        %1159 = vmatpush1.msra.mxu0 %v1125
        %1160 = vmatprep.subr.mxu0 0.0
        %1161 = vmatpush1.msra.mxu0 %v1126
        %1162 = vmatprep.subr.mxu0 0.0
        %1163 = vmatpush1.msra.mxu0 %v1127
        %1164 = vmatprep.subr.mxu0 0.0
        %1165 = vmatpush1.msra.mxu0 0.0
        %1166 = vmatprep.subr.mxu0 0.0
        %1167 = vmatpush1.msra.mxu0 0.0
        %1168 = vmatprep.subr.mxu0 0.0
        %1169 = vmatpush1.msra.mxu0 0.0
        %1170 = vmatprep.subr.mxu0 0.0
        %1171 = vmatpush1.msra.mxu0 0.0
        %1172 = vmatprep.subr.mxu0 0.0
        %1173 = vmatpush1.msra.mxu0 0.0
        %1174 = vmatprep.subr.mxu0 0.0
        %1175 = vmatpush1.msra.mxu0 0.0
        %1176 = vmatprep.subr.mxu0 0.0
        %1177 = vmatpush1.msra.mxu0 0.0
        %1178 = vmatprep.subr.mxu0 0.0
        %1179 = vmatpush1.msra.mxu0 0.0
        %1180 = vmatprep.subr.mxu0 0.0
        %1181 = vmatpush1.msra.mxu0 0.0
        %1182 = vmatprep.subr.mxu0 0.0
        %1183 = vmatpush1.msra.mxu0 0.0
        %1184 = vmatprep.subr.mxu0 0.0
        %1185 = vmatpush1.msra.mxu0 0.0
        %1186 = vmatprep.subr.mxu0 0.0
        %1187 = vmatpush1.msra.mxu0 0.0
        %1188 = vmatprep.subr.mxu0 0.0
        %1189 = vmatpush1.msra.mxu0 0.0
        %1190 = vmatprep.subr.mxu0 0.0
        %1191 = vmatpush1.msra.mxu0 0.0
        %1192 = vmatprep.subr.mxu0 0.0
        %1193 = vmatpush1.msra.mxu0 0.0
        %1194 = vmatprep.subr.mxu0 0.0
        %1195 = vmatpush1.msra.mxu0 0.0
        %1196 = vmatprep.mubr.f32.mxu0 0.0
        %1197 = vmatmul.mubr.f32.gmra.mrb[0].mxu0 %v1128
        %v1198 = vpop.f32.mrb[0].mxu0
        %v1199 = vadd.f32 %v385, %v1198
        %v1200 = vpop.f32.mrb[0].mxu0
        %1201 = vmatprep.mubr.f32.mxu0 0.0
        %1202 = vmatmul.mubr.f32.gmra.mrb[0].mxu0 %v1129
        %v1203 = vpop.f32.mrb[0].mxu0
        %v1204 = vadd.f32 %v390, %v1203
        %v1205 = vpop.f32.mrb[0].mxu0
        %1206 = vmatprep.mubr.f32.mxu0 0.0
        %1207 = vmatmul.mubr.f32.gmra.mrb[0].mxu0 %v1130
        %v1208 = vpop.f32.mrb[0].mxu0
        %v1209 = vadd.f32 %v395, %v1208
        %v1210 = vpop.f32.mrb[0].mxu0
        %1211 = vmatprep.mubr.f32.mxu0 0.0
        %1212 = vmatmul.mubr.f32.gmra.mrb[0].mxu0 %v1131
        %v1213 = vpop.f32.mrb[0].mxu0
        %v1214 = vadd.f32 %v400, %v1213
        %v1215 = vpop.f32.mrb[0].mxu0
        %1216 = vdwg.mxu0
        %v1217 = vmax.f32 %v1199, 0.0
        %v1218 = vmax.f32 %v1204, 0.0
        %v1219 = vmax.f32 %v1209, 0.0
        %v1220 = vmax.f32 %v1214, 0.0
        %v1221 = vmul.f32 %v419, %v1217
        %v1222 = vmul.f32 %v424, %v1218
        %v1223 = vmul.f32 %v429, %v1219
        %v1224 = vmul.f32 %v434, %v1220
        %v1225 = vadd.f32 %v1221, %v1222
        %v1226 = vadd.f32 %v1225, %v1223
        %v1227 = vadd.f32 %v1226, %v1224
        %v1228 = vrot.slane %v1227, 4
        %v1229 = vadd.f32 %v1227, %v1228
        %v1230 = vrot.slane %v1229, 2
        %v1231 = vadd.f32 %v1229, %v1230
        %v1232 = vrot.slane %v1231, 1
        %v1233 = vadd.f32 %v1231, %v1232
        %v1234 = vadd.f32 %v1233, %v411
        %s1235 = scalar_lea.vmem %s274, 1 [#allocation3]
        %1236 = vst.msk [vmem:[%s1235] sm:$0x1] %vm836, %v1234
        %s1237 = sand.u32 %s183, 1
        %s1238 = scalar_lea.sflag [#allocation4], %s1237
        %s1239 = sand.u32 %s183, 1
        %s1240 = smul.addr %s1239, 2
        %s1241 = scalar_lea.vmem [#allocation3], %s1240
        // Predicated region
        $region49: #{tpu_custom_call.1} parent=47 // pred_check
          %p1242 = pneg %p193
        $region50: #{tpu_custom_call.1} parent=47 // pred_check_branch
          %1244 = sbr.rel (%p1242) target = $region52
        $region51: #{tpu_custom_call.1} parent=47 // pred_region
          %s1245 = smul.u32 2, %s23
          %s1247 = ssub.s32 32, 32
          %1248 = vsyncadd %s1238, %s1247
          %s1249 = smul.addr %s1245, 16
          %s1250 = scalar_lea.hbm %s7, %s1249
          %s1252 = sshll.u32 %s1241, 4
          %s1253 = int_to_ptr.vmem [resolvable:$true] %s1252
          %1255 = dma.vmem_to_hbm [thread:$0]  %s1253, 32, %s1250, %s1238
        $region52: #{tpu_custom_call.1} parent=47 // pred_fallthru
          _
      $region48: #{tpu_custom_call.1} parent=5 // pred_fallthru
        _
      %p1256 = scmp.le.s32.totalorder 2, %s18
      // Predicated region
      $region53: #{tpu_custom_call.1} parent=5 // pred_check
        %p1257 = pneg %p1256
      $region54: #{tpu_custom_call.1} parent=5 // pred_check_branch
        %1259 = sbr.rel (%p1257) target = $region56
      $region55: #{tpu_custom_call.1} parent=5 // pred_region
        %s1260 = ssub.s32 %s18, 2
        // Predicated region
        $region57: #{tpu_custom_call.1} parent=55 // pred_check
          %p1261 = pneg %p199
        $region58: #{tpu_custom_call.1} parent=55 // pred_check_branch
          %1263 = sbr.rel (%p1261) target = $region60
        $region59: #{tpu_custom_call.1} parent=55 // pred_region
          %s1264 = sand.u32 %s184, 1
          %s1265 = scalar_lea.sflag [#allocation4], %s1264
          %s1266 = sand.u32 %s184, 1
          %s1267 = smul.addr %s1266, 2
          %s1268 = scalar_lea.vmem [#allocation3], %s1267
          %1269 = dma.done %s1265, 32
        $region60: #{tpu_custom_call.1} parent=55 // pred_fallthru
          _
      $region56: #{tpu_custom_call.1} parent=5 // pred_fallthru
        _
    $region6: #{tpu_custom_call.1} parent=1 // loop_footer
      %s22 = sadd.s32 1, %s18
    $region7: #{tpu_custom_call.1} parent=1 // loop_footer_branch
      %17 = sbr.rel target = $region3
    $region8: #{tpu_custom_call.1} parent=1 // loop_exit
      _
    %1270 = vsyncpa [#allocation4], 1
    %s1271 = scalar_lea.sflag [#allocation4], 1
    %1272 = vsyncpa %s1271, 1

</llo_original>
